<compile_context>
chip_gen: v5e
topology: v5e:2x2
jax: 0.10.0
libtpu: 0.0.40
codegen_flags: <defaults>
</compile_context>

<pallas_src>
import functools
import math

import jax
import jax.numpy as jnp
import numpy as np
from jax.experimental import pallas as pl
from jax.experimental.pallas import tpu as pltpu


# ---------------------------------------------------------------------------
# VMEM budgeting (generation-aware).
# ---------------------------------------------------------------------------
def _vmem_config():
    """Returns (block_budget_bytes, vmem_limit_bytes)."""
    try:
        phys = int(pltpu.get_tpu_info().vmem_capacity_bytes)
    except Exception:                       # unknown runtime -> assume v7x's 64 MiB
        phys = 64 * 1024 * 1024
    budget = min(phys * 5 // 8, 80 * 1024 * 1024)     # ~40 MiB v7x, ~80 MiB v5e/v6e
    limit = min(phys * 3 // 4, budget + (16 << 20))   # explicit scoped-VMEM limit
    return budget, limit


# ---------------------------------------------------------------------------
# Interpolation weight matrices (NumPy, cached -> baked-in constants).
# ---------------------------------------------------------------------------
@functools.lru_cache(maxsize=None)
def _axis_weight_matrix(in_size, out_size, coord_scale):
    """(out_size, in_size) row-stochastic bilinear matrix, align_corners=False.

    coord_scale is the factor in PyTorch's half-pixel transform
        src = max((dst + 0.5) * coord_scale - 0.5, 0).
    """
    dst = np.arange(out_size, dtype=np.float64)
    src = np.maximum((dst + 0.5) * float(coord_scale) - 0.5, 0.0)
    i0 = np.minimum(np.floor(src).astype(np.int64), in_size - 1)
    i1 = np.minimum(i0 + 1, in_size - 1)
    w1 = src - i0
    w0 = 1.0 - w1
    m = np.zeros((out_size, in_size), dtype=np.float64)
    np.add.at(m, (np.arange(out_size), i0), w0)
    np.add.at(m, (np.arange(out_size), i1), w1)
    return m.astype(np.float32)


@functools.lru_cache(maxsize=None)
def _fused_weight_matrix(H, W, H_out, W_out, sh, sw):
    """Pre-transposed Kronecker matrix Wt[h*W + w, o*W_out + p] = wh[o,h]*ww[p,w]."""
    wh = _axis_weight_matrix(H, H_out, sh)     # (H_out, H)
    ww = _axis_weight_matrix(W, W_out, sw)     # (W_out, W)
    return np.einsum('oh,pw->hwop', wh, ww).reshape(H * W, H_out * W_out)


# ---------------------------------------------------------------------------
# Generic row-tiled matmul kernel with a VMEM-resident weight.
# ---------------------------------------------------------------------------
def _row_matmul_kernel(x_ref, w_ref, o_ref):
    # x_ref: (tb, K) rows, w_ref: (K, P_blk) resident weight, o_ref: (tb, P_blk)
    o_ref[...] = jnp.dot(
        x_ref[...], w_ref[...], preferred_element_type=jnp.float32
    ).astype(o_ref.dtype)


def _row_matmul(x2d, w_np, *, budget, vmem_limit):
    """out = x2d @ w, rows of x tiled over the grid, weight resident in VMEM."""
    R, K = x2d.shape
    K2, P = w_np.shape
    assert K == K2
    itemsize = x2d.dtype.itemsize

    # Lane-dense stores: pad the output dim up to a multiple of 128 by adding
    # zero weight columns; slice the result afterwards.
    P_pad = P if (P <= 128 or P % 128 == 0) else ((P + 127) // 128) * 128
    if P_pad != P:
        w_np = np.pad(w_np, ((0, 0), (0, P_pad - P)))

    w_bytes = 2 * K * P_pad * itemsize        # double-buffered resident weight
    per_row = 2 * (K + P_pad) * itemsize      # double-buffered input + output rows

    if R < 16:
        tb = R                                 # block == full dim -> always legal
    else:
        avail = max(budget - w_bytes, 8 * per_row)
        tb_budget = max(8, (avail // per_row) // 8 * 8)
        tb_target = ((-(-R // 4)) + 7) // 8 * 8   # aim for >= 4 row steps
        tb = int(max(8, min(512, tb_budget, tb_target)))
    row_steps = int(pl.cdiv(R, tb))

    # Small-batch calls: split the output columns (128-aligned) so a v7x
    # megacore still gets two parallel blocks and DMA/compute overlap.
    cb = 2 if (row_steps == 1 and P_pad % 256 == 0) else 1
    P_blk = P_pad // cb

    out = pl.pallas_call(
        _row_matmul_kernel,
        out_shape=jax.ShapeDtypeStruct((R, P_pad), x2d.dtype),
        grid_spec=pltpu.PrefetchScalarGridSpec(
            num_scalar_prefetch=0,
            grid=(row_steps, cb),
            in_specs=[
                pl.BlockSpec((tb, K), lambda i, j: (i, 0)),
                pl.BlockSpec((K, P_blk), lambda i, j: (0, j)),  # resident weight
            ],
            out_specs=pl.BlockSpec((tb, P_blk), lambda i, j: (i, j)),
        ),
        compiler_params=pltpu.CompilerParams(
            dimension_semantics=("parallel", "parallel"),
            vmem_limit_bytes=int(vmem_limit),
        ),
    )(x2d, jnp.asarray(w_np, dtype=x2d.dtype))

    return out if P_pad == P else out[:, :P]


# ---------------------------------------------------------------------------
# Public wrapper: bilinear interpolation, NCHW.
# ---------------------------------------------------------------------------
def interpolate_bilinear(x, size=None, scale=None, _force_separable=False):
    """F.interpolate(x, size=..., scale_factor=..., mode='bilinear',
    align_corners=False) for NCHW inputs. Returns x.dtype."""
    assert (size is None) != (scale is None)
    N, C, H, W = x.shape

    if size is not None:
        H_out, W_out = (size, size) if isinstance(size, int) else tuple(int(s) for s in size)
        sh, sw = H / H_out, W / W_out
    else:
        if isinstance(scale, (tuple, list)):
            sc_h, sc_w = float(scale[0]), float(scale[1])
        else:
            sc_h = sc_w = float(scale)
        # PyTorch >= 1.6 default (recompute_scale_factor=None): output size is
        # floor(in * scale); the coordinate transform uses 1/scale directly.
        H_out, W_out = int(math.floor(H * sc_h)), int(math.floor(W * sc_w))
        sh, sw = 1.0 / sc_h, 1.0 / sc_w

    B, K, P = N * C, H * W, H_out * W_out
    itemsize = x.dtype.itemsize
    budget, vmem_limit = _vmem_config()

    # Fused path: one lane-dense MXU matmul per grid step.
    fused_bytes = 2 * K * P * itemsize + 16 * 2 * (K + P) * itemsize
    if fused_bytes <= budget and not _force_separable:
        w_fused = _fused_weight_matrix(H, W, H_out, W_out, sh, sw)
        out_flat = _row_matmul(x.reshape(B, K), w_fused,
                               budget=budget, vmem_limit=vmem_limit)
        return out_flat.reshape(N, C, H_out, W_out)

    # Separable two-pass fallback: tiny weights, linear FLOPs, scales to large
    # feature maps that the fused Kronecker matrix cannot fit in VMEM.
    wh = _axis_weight_matrix(H, H_out, sh)     # (H_out, H)
    ww = _axis_weight_matrix(W, W_out, sw)     # (W_out, W)
    t = _row_matmul(x.reshape(B * H, W), np.ascontiguousarray(ww.T),
                    budget=budget, vmem_limit=vmem_limit)        # (B*H, W_out)
    t = t.reshape(B, H, W_out).transpose(0, 2, 1).reshape(B * W_out, H)
    o = _row_matmul(t, np.ascontiguousarray(wh.T),
                    budget=budget, vmem_limit=vmem_limit)        # (B*W_out, H_out)
    return (o.reshape(B, W_out, H_out)
             .transpose(0, 2, 1)
             .reshape(N, C, H_out, W_out))


# ---------------------------------------------------------------------------
# Independent reference (gather + lerp, PyTorch align_corners=False semantics).
# ---------------------------------------------------------------------------
def _reference_bilinear(x_np, h_out, w_out):
    n, c, h, w = x_np.shape
    x64 = x_np.astype(np.float64)

    def taps(out_size, in_size):
        d = np.arange(out_size, dtype=np.float64)
        s = np.maximum((d + 0.5) * (in_size / out_size) - 0.5, 0.0)
        i0 = np.minimum(np.floor(s).astype(np.int64), in_size - 1)
        i1 = np.minimum(i0 + 1, in_size - 1)
        return i0, i1, s - i0

    r0, r1, wr = taps(h_out, h)
    c0, c1, wc = taps(w_out, w)
    top = x64[:, :, r0][:, :, :, c0] * (1.0 - wc) + x64[:, :, r0][:, :, :, c1] * wc
    bot = x64[:, :, r1][:, :, :, c0] * (1.0 - wc) + x64[:, :, r1][:, :, :, c1] * wc
    out = top * (1.0 - wr)[:, None] + bot * wr[:, None]
    return out.astype(np.float32)


if __name__ == "__main__":
    key = jax.random.PRNGKey(0)
    N, C, H, W = 2, 4, 16, 16
    scale = 2
    x = jax.random.normal(key, (N, C, H, W), dtype=jnp.float32)

    ref = _reference_bilinear(np.asarray(x), H * scale, W * scale)

    # Primary fused-Kronecker path.
    out = jax.block_until_ready(interpolate_bilinear(x, scale=scale))
    assert out.shape == (N, C, H * scale, W * scale)
    err = float(np.max(np.abs(np.asarray(out) - ref)))
    assert err < 1e-4, f"fused path: max abs error {err} vs reference"

    # Separable two-pass fallback path (used for large feature maps).
    out_sep = jax.block_until_ready(
        interpolate_bilinear(x, scale=scale, _force_separable=True))
    err_sep = float(np.max(np.abs(np.asarray(out_sep) - ref)))
    assert err_sep < 1e-4, f"separable path: max abs error {err_sep} vs reference"

    print("KERNEL_OK")
</pallas_src>

<mosaic_0001>
module attributes {stable_mosaic.version = 11 : i64} {
  func.func @_row_matmul_kernel(%arg0: i32, %arg1: i32, %arg2: memref<8x256xf32, #tpu.memory_space<vmem>>, %arg3: memref<256x512xf32, #tpu.memory_space<vmem>>, %arg4: memref<8x512xf32, #tpu.memory_space<vmem>>) attributes {dimension_semantics = [#tpu.dimension_semantics<parallel>, #tpu.dimension_semantics<parallel>], iteration_bounds = array<i64: 1, 2>, scalar_prefetch = 0 : i64, scratch_operands = 0 : i64, tpu.core_type = #tpu.core_type<tc>, window_params = [{transform_indices = @transform_0, window_bounds = array<i64: 8, 256>}, {transform_indices = @transform_1, window_bounds = array<i64: 256, 512>}, {transform_indices = @transform_2, window_bounds = array<i64: 8, 512>}]} {
    %c0 = arith.constant 0 : index
    %c0_0 = arith.constant 0 : index
    %0 = vector.load %arg2[%c0, %c0_0] : memref<8x256xf32, #tpu.memory_space<vmem>>, vector<8x256xf32>
    %c0_1 = arith.constant 0 : index
    %c0_2 = arith.constant 0 : index
    %1 = vector.load %arg3[%c0_1, %c0_2] : memref<256x512xf32, #tpu.memory_space<vmem>>, vector<256x512xf32>
    %cst = arith.constant dense<0.000000e+00> : vector<8x512xf32>
    %2 = tpu.matmul %0, %1, %cst {dimension_numbers = #tpu.dot_dimension_numbers<[1], [0], [0], [1], [0, 0, 1, 1], [], []>} : vector<8x256xf32>, vector<256x512xf32>, vector<8x512xf32> -> vector<8x512xf32>
    %c0_3 = arith.constant 0 : index
    %c0_4 = arith.constant 0 : index
    %3 = vector.load %arg4[%c0_3, %c0_4] : memref<8x512xf32, #tpu.memory_space<vmem>>, vector<8x512xf32>
    tpu.vector_store %arg4[%c0_3, %c0_4], %2 {strides = array<i32>} : memref<8x512xf32, #tpu.memory_space<vmem>>, vector<8x512xf32>,
    return
  }
  func.func @transform_0(%arg0: i32, %arg1: i32) -> (i32, i32) {
    %c0_i32 = arith.constant 0 : i32
    %c0_i32_0 = arith.constant 0 : i32
    return %arg0, %c0_i32 : i32, i32
  }
  func.func @transform_1(%arg0: i32, %arg1: i32) -> (i32, i32) {
    %c0_i32 = arith.constant 0 : i32
    %c0_i32_0 = arith.constant 0 : i32
    return %c0_i32, %arg1 : i32, i32
  }
  func.func @transform_2(%arg0: i32, %arg1: i32) -> (i32, i32) {
    %c0_i32 = arith.constant 0 : i32
    return %arg0, %arg1 : i32, i32
  }
}

</mosaic_0001>

<llo_original>
// kernel: tpu_custom_call.1
$region0: #{tpu_custom_call.1}
  #allocation0 [shape = 'u32[]', space=smem, size = 0x4, offset = 0x4, fixed_abs, tag = 'smem constant byte address 0x4 - core index']
  #allocation1 [shape = 'u32[72,128]{1,0:T(1,128)}', space=vmem, size = 0x9000, scoped, tag = 'internal scratch']
  %s0 = inlined_call_operand.hbm [shape: f32[8,256], index: 0, kind: input, shape index: {}]
  %s1 = inlined_call_operand.hbm [shape: f32[256,1024], index: 1, kind: input, shape index: {}]
  %s2 = inlined_call_operand.hbm [shape: f32[8,1024], index: 2, kind: output, shape index: {}]
  %s3 = sld [smem:[#allocation0]]
  $region49: #{tpu_custom_call.1} parent=0
    _
  %s5 = ssub.s32 1, %s3
  %s6 = scalar_select 0, %s5, %s3
  $region1: #{tpu_custom_call.1} parent=0
    #allocation2 [shape = 'u8[8192]{0}', space=vmem, size = 0x2000, scoped, tag = 'input window, operand 0, single buffered']
    #allocation3 [shape = 's32[2]{0}', space=sflag, size = 0x8, scoped, tag = 'scoped memory for tpu_custom_call.1']
    #allocation4 [shape = 's32[2]{0}', space=sflag, size = 0x8, scoped, tag = 'scoped memory for tpu_custom_call.1']
    #allocation5 [shape = 'u8[1048576]{0}', space=vmem, size = 0x100000, scoped, tag = 'input window, operand 1']
    #allocation6 [shape = 's32[2]{0}', space=sflag, size = 0x8, scoped, tag = 'scoped memory for tpu_custom_call.1']
    #allocation7 [shape = 'u8[32768]{0}', space=vmem, size = 0x8000, scoped, tag = 'output window, operand 0']
    %7 = vsyncpa [#allocation3], 0
    %8 = vsyncpa [#allocation6], 0
    %s9 = scalar_lea.sflag [#allocation6], 1
    %10 = vsyncpa %s9, 0
    %11 = vsyncpa [#allocation4], 0
    %s12 = scalar_lea.sflag [#allocation4], 1
    %13 = vsyncpa %s12, 0
    loop: start=0, step=1, limit=4
    $region2: #{tpu_custom_call.1} parent=1 // loop_pre_header
      _
    $region3: #{tpu_custom_call.1} parent=1 // loop_header
      %s15 = sphi 0, %s19
      %p16 = scmp.ge.s32.totalorder %s15, 4
      %s22 = sphi 0, %s34
      %s23 = sphi 0, %s30
      %s24 = sphi 0, %s22
      %s25 = sphi 0, %s23
      %s26 = sphi 0, %s24
      %s27 = sphi 0, %s25
      %s37 = sphi 0, %s39
      %s40 = sphi 0, %s37
      %s41 = sphi 0, %s40
      %s57 = sphi 0, %s41
      %s63 = sphi 0, %s65
      %s66 = sphi 0, %s63
      %s67 = sphi 0, %s66
      %s83 = sphi 0, %s67
      %s91 = sphi 0, %s93
      %s94 = sphi 0, %s91
      %s95 = sphi 0, %s94
      %s111 = sphi 0, %s95
    $region4: #{tpu_custom_call.1} parent=1 // loop_header_branch
      %18 = sbr.rel (%p16) target = $region8
    $region5: #{tpu_custom_call.1} parent=1 // loop_body
      %s20 = ssub.s32 %s15, 1
      %s21 = ssub.s32 %s15, 2
      %s28 = sadd.s32 1, %s23
      %p29 = scmp.ge.s32.totalorder %s28, 2
      %s30 = scalar_select %p29, 0, %s28
      %s31 = sadd.s32 1, %s22
      %s32 = scalar_select %p29, %s31, %s22
      %p33 = scmp.ge.s32.totalorder %s32, 1
      %s34 = scalar_select %p33, 0, %s32
      %s35 = ssub.s32 %s22, %s34
      %p36 = scmp.eq.s32.totalorder %s35, 0
      %s38 = sadd.s32 %s37, 1
      %s39 = scalar_select %p36, %s37, %s38
      %p42 = pneg %p36
      %p43 = scmp.eq.s32.totalorder %s15, 1
      %p44 = por %p42, %p43
      %p45 = scmp.ne.s32.totalorder %s37, %s40
      %p46 = scmp.eq.s32.totalorder %s15, 0
      %p47 = por %p45, %p46
      %p48 = scmp.ne.s32.totalorder %s37, %s40
      %p49 = scmp.eq.s32.totalorder %s20, 1
      %p50 = por %p48, %p49
      %p51 = scmp.ne.s32.totalorder %s40, %s41
      %p52 = scmp.eq.s32.totalorder %s20, 0
      %p53 = por %p51, %p52
      %p54 = scmp.ne.s32.totalorder %s40, %s41
      %p55 = scmp.eq.s32.totalorder %s21, 1
      %p56 = por %p54, %p55
      %p58 = scmp.ne.s32.totalorder %s41, %s57
      %p59 = scmp.eq.s32.totalorder %s21, 0
      %p60 = por %p58, %p59
      %s61 = ssub.s32 %s23, %s30
      %p62 = scmp.eq.s32.totalorder %s61, 0
      %s64 = sadd.s32 %s63, 1
      %s65 = scalar_select %p62, %s63, %s64
      %p68 = pneg %p62
      %p69 = scmp.eq.s32.totalorder %s15, 1
      %p70 = por %p68, %p69
      %p71 = scmp.ne.s32.totalorder %s63, %s66
      %p72 = scmp.eq.s32.totalorder %s15, 0
      %p73 = por %p71, %p72
      %p74 = scmp.ne.s32.totalorder %s63, %s66
      %p75 = scmp.eq.s32.totalorder %s20, 1
      %p76 = por %p74, %p75
      %p77 = scmp.ne.s32.totalorder %s66, %s67
      %p78 = scmp.eq.s32.totalorder %s20, 0
      %p79 = por %p77, %p78
      %p80 = scmp.ne.s32.totalorder %s66, %s67
      %p81 = scmp.eq.s32.totalorder %s21, 1
      %p82 = por %p80, %p81
      %p84 = scmp.ne.s32.totalorder %s67, %s83
      %p85 = scmp.eq.s32.totalorder %s21, 0
      %p86 = por %p84, %p85
      %s87 = ssub.s32 %s22, %s34
      %s88 = ssub.s32 %s23, %s30
      %s89 = sor.u32 %s87, %s88
      %p90 = scmp.eq.s32.totalorder %s89, 0
      %s92 = sadd.s32 %s91, 1
      %s93 = scalar_select %p90, %s91, %s92
      %p96 = pneg %p90
      %p97 = scmp.eq.s32.totalorder %s15, 1
      %p98 = por %p96, %p97
      %p99 = scmp.ne.s32.totalorder %s91, %s94
      %p100 = scmp.eq.s32.totalorder %s15, 0
      %p101 = por %p99, %p100
      %p102 = scmp.ne.s32.totalorder %s91, %s94
      %p103 = scmp.eq.s32.totalorder %s20, 1
      %p104 = por %p102, %p103
      %p105 = scmp.ne.s32.totalorder %s94, %s95
      %p106 = scmp.eq.s32.totalorder %s20, 0
      %p107 = por %p105, %p106
      %p108 = scmp.ne.s32.totalorder %s94, %s95
      %p109 = scmp.eq.s32.totalorder %s21, 1
      %p110 = por %p108, %p109
      %p112 = scmp.ne.s32.totalorder %s95, %s111
      %p113 = scmp.eq.s32.totalorder %s21, 0
      %p114 = por %p112, %p113
      %p115 = scmp.le.s32.totalorder 1, %s15
      %p116 = scmp.lt.s32.totalorder %s15, 3
      %p117 = pnand %p115, %p116
      %p118 = pneg %p117
      // Predicated region
      $region9: #{tpu_custom_call.1} parent=5 // pred_check
        _
      $region10: #{tpu_custom_call.1} parent=5 // pred_check_branch
        %120 = sbr.rel (%p117) target = $region12
      $region11: #{tpu_custom_call.1} parent=5 // pred_region
        %s121 = ssub.s32 %s15, 1
        // Predicated region
        $region13: #{tpu_custom_call.1} parent=11 // pred_check
          %p122 = pneg %p53
        $region14: #{tpu_custom_call.1} parent=11 // pred_check_branch
          %124 = sbr.rel (%p122) target = $region16
        $region15: #{tpu_custom_call.1} parent=11 // pred_region
          %126 = vsyncadd [#allocation3], 0
          %s127 = smul.addr %s24, 2
          %s128 = smul.addr %s127, 8
          %s129 = scalar_lea.hbm %s0, %s128
          %s131 = sshll.u32 %s129, 4
          %s132 = int_to_ptr.hbm [resolvable:$true] %s131
          %s133 = sshll.u32 [#allocation2], 4
          %s134 = int_to_ptr.vmem [resolvable:$true] %s133
          %136 = dma.hbm_to_vmem [thread:$0]  %s132, 256, %s134, [#allocation3]
        $region16: #{tpu_custom_call.1} parent=11 // pred_fallthru
          _
      $region12: #{tpu_custom_call.1} parent=5 // pred_fallthru
        _
      %p137 = scmp.lt.s32.totalorder %s15, 2
      // Predicated region
      $region17: #{tpu_custom_call.1} parent=5 // pred_check
        %p138 = pneg %p137
      $region18: #{tpu_custom_call.1} parent=5 // pred_check_branch
        %140 = sbr.rel (%p138) target = $region20
      $region19: #{tpu_custom_call.1} parent=5 // pred_region
        // Predicated region
        $region21: #{tpu_custom_call.1} parent=19 // pred_check
          %p141 = pneg %p73
        $region22: #{tpu_custom_call.1} parent=19 // pred_check_branch
          %143 = sbr.rel (%p141) target = $region24
        $region23: #{tpu_custom_call.1} parent=19 // pred_region
          %s144 = sand.u32 %s63, 1
          %s145 = scalar_lea.sflag [#allocation6], %s144
          %s146 = sand.u32 %s63, 1
          %s147 = smul.addr %s146, 1024
          %s148 = scalar_lea.vmem [#allocation5], %s147
          %s149 = smul.u32 4, %s23
          %151 = vsyncadd %s145, 0
          %s152 = smul.addr %s149, 8
          %s153 = scalar_lea.hbm %s1, %s152
          %s154 = sshll.u32 %s153, 4
          %s155 = int_to_ptr.hbm [resolvable:$true] %s154
          %s156 = sshll.u32 %s148, 4
          %s157 = int_to_ptr.vmem [resolvable:$true] %s156
          %162 = dma.hbm_to_vmem [thread:$0]  %s155, 16384, %s157, %s145, 1024, 512, 32
        $region24: #{tpu_custom_call.1} parent=19 // pred_fallthru
          _
      $region20: #{tpu_custom_call.1} parent=5 // pred_fallthru
        _
      %p163 = scmp.le.s32.totalorder 1, %s15
      %p164 = scmp.lt.s32.totalorder %s15, 3
      %p165 = pnand %p163, %p164
      %p166 = pneg %p165
      // Predicated region
      $region25: #{tpu_custom_call.1} parent=5 // pred_check
        _
      $region26: #{tpu_custom_call.1} parent=5 // pred_check_branch
        %168 = sbr.rel (%p165) target = $region28
      $region27: #{tpu_custom_call.1} parent=5 // pred_region
        %s169 = ssub.s32 %s15, 1
        // Predicated region
        $region29: #{tpu_custom_call.1} parent=27 // pred_check
          %p170 = pneg %p53
        $region30: #{tpu_custom_call.1} parent=27 // pred_check_branch
          %172 = sbr.rel (%p170) target = $region32
        $region31: #{tpu_custom_call.1} parent=27 // pred_region
          %174 = dma.done [#allocation3], 256
        $region32: #{tpu_custom_call.1} parent=27 // pred_fallthru
          _
        %s175 = sand.u32 %s66, 1
        %s176 = scalar_lea.sflag [#allocation6], %s175
        %s177 = sand.u32 %s66, 1
        %s178 = smul.addr %s177, 1024
        %s179 = scalar_lea.vmem [#allocation5], %s178
        // Predicated region
        $region33: #{tpu_custom_call.1} parent=27 // pred_check
          %p180 = pneg %p79
        $region34: #{tpu_custom_call.1} parent=27 // pred_check_branch
          %182 = sbr.rel (%p180) target = $region36
        $region35: #{tpu_custom_call.1} parent=27 // pred_region
          %184 = dma.done %s176, 16384
        $region36: #{tpu_custom_call.1} parent=27 // pred_fallthru
          _
        %p185 = pneg %p53
        %p186 = pneg %p50
        %s187 = sand.u32 %s66, 1
        %s188 = scalar_lea.sflag [#allocation6], %s187
        %s189 = sand.u32 %s66, 1
        %s190 = smul.addr %s189, 1024
        %s191 = scalar_lea.vmem [#allocation5], %s190
        %p192 = pneg %p79
        %p193 = pneg %p76
        %p194 = pneg %p107
        %p195 = pneg %p104
        %s196 = sand.u32 %s94, 1
        %s197 = scalar_lea.sflag [#allocation4], %s196
        %s198 = sand.u32 %s94, 1
        %s199 = smul.addr %s198, 32
        %s200 = scalar_lea.vmem [#allocation7], %s199
        %s201 = smul.u32 4, %s25
        %s202 = smul.u32 4, %s25
        %v203 = vld [vmem:[#allocation2] sm:$0xff]
        %v204 = vld [vmem:[#allocation2 + $0x8] sm:$0xff]
        %v205 = vld [vmem:[%s179] sm:$0xff]
        %v206 = vld [vmem:[%s179 + $0x8] sm:$0xff]
        %v207 = vld [vmem:[%s179 + $0x10] sm:$0xff]
        %v208 = vld [vmem:[%s179 + $0x18] sm:$0xff]
        %v209 = vld [vmem:[%s179 + $0x20] sm:$0xff]
        %v210 = vld [vmem:[%s179 + $0x28] sm:$0xff]
        %v211 = vld [vmem:[%s179 + $0x30] sm:$0xff]
        %v212 = vld [vmem:[%s179 + $0x38] sm:$0xff]
        %v213 = vld [vmem:[%s179 + $0x40] sm:$0xff]
        %v214 = vld [vmem:[%s179 + $0x48] sm:$0xff]
        %v215 = vld [vmem:[%s179 + $0x50] sm:$0xff]
        %v216 = vld [vmem:[%s179 + $0x58] sm:$0xff]
        %v217 = vld [vmem:[%s179 + $0x60] sm:$0xff]
        %v218 = vld [vmem:[%s179 + $0x68] sm:$0xff]
        %v219 = vld [vmem:[%s179 + $0x70] sm:$0xff]
        %v220 = vld [vmem:[%s179 + $0x78] sm:$0xff]
        %v221 = vld [vmem:[%s179 + $0x80] sm:$0xff]
        %v222 = vld [vmem:[%s179 + $0x88] sm:$0xff]
        %v223 = vld [vmem:[%s179 + $0x90] sm:$0xff]
        %v224 = vld [vmem:[%s179 + $0x98] sm:$0xff]
        %v225 = vld [vmem:[%s179 + $0xa0] sm:$0xff]
        %v226 = vld [vmem:[%s179 + $0xa8] sm:$0xff]
        %v227 = vld [vmem:[%s179 + $0xb0] sm:$0xff]
        %v228 = vld [vmem:[%s179 + $0xb8] sm:$0xff]
        %v229 = vld [vmem:[%s179 + $0xc0] sm:$0xff]
        %v230 = vld [vmem:[%s179 + $0xc8] sm:$0xff]
        %v231 = vld [vmem:[%s179 + $0xd0] sm:$0xff]
        %v232 = vld [vmem:[%s179 + $0xd8] sm:$0xff]
        %v233 = vld [vmem:[%s179 + $0xe0] sm:$0xff]
        %v234 = vld [vmem:[%s179 + $0xe8] sm:$0xff]
        %v235 = vld [vmem:[%s179 + $0xf0] sm:$0xff]
        %v236 = vld [vmem:[%s179 + $0xf8] sm:$0xff]
        %v237 = vld [vmem:[%s179 + $0x100] sm:$0xff]
        %v238 = vld [vmem:[%s179 + $0x108] sm:$0xff]
        %v239 = vld [vmem:[%s179 + $0x110] sm:$0xff]
        %v240 = vld [vmem:[%s179 + $0x118] sm:$0xff]
        %v241 = vld [vmem:[%s179 + $0x120] sm:$0xff]
        %v242 = vld [vmem:[%s179 + $0x128] sm:$0xff]
        %v243 = vld [vmem:[%s179 + $0x130] sm:$0xff]
        %v244 = vld [vmem:[%s179 + $0x138] sm:$0xff]
        %v245 = vld [vmem:[%s179 + $0x140] sm:$0xff]
        %v246 = vld [vmem:[%s179 + $0x148] sm:$0xff]
        %v247 = vld [vmem:[%s179 + $0x150] sm:$0xff]
        %v248 = vld [vmem:[%s179 + $0x158] sm:$0xff]
        %v249 = vld [vmem:[%s179 + $0x160] sm:$0xff]
        %v250 = vld [vmem:[%s179 + $0x168] sm:$0xff]
        %v251 = vld [vmem:[%s179 + $0x170] sm:$0xff]
        %v252 = vld [vmem:[%s179 + $0x178] sm:$0xff]
        %v253 = vld [vmem:[%s179 + $0x180] sm:$0xff]
        %v254 = vld [vmem:[%s179 + $0x188] sm:$0xff]
        %v255 = vld [vmem:[%s179 + $0x190] sm:$0xff]
        %v256 = vld [vmem:[%s179 + $0x198] sm:$0xff]
        %v257 = vld [vmem:[%s179 + $0x1a0] sm:$0xff]
        %v258 = vld [vmem:[%s179 + $0x1a8] sm:$0xff]
        %v259 = vld [vmem:[%s179 + $0x1b0] sm:$0xff]
        %v260 = vld [vmem:[%s179 + $0x1b8] sm:$0xff]
        %v261 = vld [vmem:[%s179 + $0x1c0] sm:$0xff]
        %v262 = vld [vmem:[%s179 + $0x1c8] sm:$0xff]
        %v263 = vld [vmem:[%s179 + $0x1d0] sm:$0xff]
        %v264 = vld [vmem:[%s179 + $0x1d8] sm:$0xff]
        %v265 = vld [vmem:[%s179 + $0x1e0] sm:$0xff]
        %v266 = vld [vmem:[%s179 + $0x1e8] sm:$0xff]
        %v267 = vld [vmem:[%s179 + $0x1f0] sm:$0xff]
        %v268 = vld [vmem:[%s179 + $0x1f8] sm:$0xff]
        %v269 = vld [vmem:[%s179 + $0x200] sm:$0xff]
        %v270 = vld [vmem:[%s179 + $0x208] sm:$0xff]
        %v271 = vld [vmem:[%s179 + $0x210] sm:$0xff]
        %v272 = vld [vmem:[%s179 + $0x218] sm:$0xff]
        %v273 = vld [vmem:[%s179 + $0x220] sm:$0xff]
        %v274 = vld [vmem:[%s179 + $0x228] sm:$0xff]
        %v275 = vld [vmem:[%s179 + $0x230] sm:$0xff]
        %v276 = vld [vmem:[%s179 + $0x238] sm:$0xff]
        %v277 = vld [vmem:[%s179 + $0x240] sm:$0xff]
        %v278 = vld [vmem:[%s179 + $0x248] sm:$0xff]
        %v279 = vld [vmem:[%s179 + $0x250] sm:$0xff]
        %v280 = vld [vmem:[%s179 + $0x258] sm:$0xff]
        %v281 = vld [vmem:[%s179 + $0x260] sm:$0xff]
        %v282 = vld [vmem:[%s179 + $0x268] sm:$0xff]
        %v283 = vld [vmem:[%s179 + $0x270] sm:$0xff]
        %v284 = vld [vmem:[%s179 + $0x278] sm:$0xff]
        %v285 = vld [vmem:[%s179 + $0x280] sm:$0xff]
        %v286 = vld [vmem:[%s179 + $0x288] sm:$0xff]
        %v287 = vld [vmem:[%s179 + $0x290] sm:$0xff]
        %v288 = vld [vmem:[%s179 + $0x298] sm:$0xff]
        %v289 = vld [vmem:[%s179 + $0x2a0] sm:$0xff]
        %v290 = vld [vmem:[%s179 + $0x2a8] sm:$0xff]
        %v291 = vld [vmem:[%s179 + $0x2b0] sm:$0xff]
        %v292 = vld [vmem:[%s179 + $0x2b8] sm:$0xff]
        %v293 = vld [vmem:[%s179 + $0x2c0] sm:$0xff]
        %v294 = vld [vmem:[%s179 + $0x2c8] sm:$0xff]
        %v295 = vld [vmem:[%s179 + $0x2d0] sm:$0xff]
        %v296 = vld [vmem:[%s179 + $0x2d8] sm:$0xff]
        %v297 = vld [vmem:[%s179 + $0x2e0] sm:$0xff]
        %v298 = vld [vmem:[%s179 + $0x2e8] sm:$0xff]
        %v299 = vld [vmem:[%s179 + $0x2f0] sm:$0xff]
        %v300 = vld [vmem:[%s179 + $0x2f8] sm:$0xff]
        %v301 = vld [vmem:[%s179 + $0x300] sm:$0xff]
        %v302 = vld [vmem:[%s179 + $0x308] sm:$0xff]
        %v303 = vld [vmem:[%s179 + $0x310] sm:$0xff]
        %v304 = vld [vmem:[%s179 + $0x318] sm:$0xff]
        %v305 = vld [vmem:[%s179 + $0x320] sm:$0xff]
        %v306 = vld [vmem:[%s179 + $0x328] sm:$0xff]
        %v307 = vld [vmem:[%s179 + $0x330] sm:$0xff]
        %v308 = vld [vmem:[%s179 + $0x338] sm:$0xff]
        %v309 = vld [vmem:[%s179 + $0x340] sm:$0xff]
        %v310 = vld [vmem:[%s179 + $0x348] sm:$0xff]
        %v311 = vld [vmem:[%s179 + $0x350] sm:$0xff]
        %v312 = vld [vmem:[%s179 + $0x358] sm:$0xff]
        %v313 = vld [vmem:[%s179 + $0x360] sm:$0xff]
        %v314 = vld [vmem:[%s179 + $0x368] sm:$0xff]
        %v315 = vld [vmem:[%s179 + $0x370] sm:$0xff]
        %v316 = vld [vmem:[%s179 + $0x378] sm:$0xff]
        %v317 = vld [vmem:[%s179 + $0x380] sm:$0xff]
        %v318 = vld [vmem:[%s179 + $0x388] sm:$0xff]
        %v319 = vld [vmem:[%s179 + $0x390] sm:$0xff]
        %v320 = vld [vmem:[%s179 + $0x398] sm:$0xff]
        %v321 = vld [vmem:[%s179 + $0x3a0] sm:$0xff]
        %v322 = vld [vmem:[%s179 + $0x3a8] sm:$0xff]
        %v323 = vld [vmem:[%s179 + $0x3b0] sm:$0xff]
        %v324 = vld [vmem:[%s179 + $0x3b8] sm:$0xff]
        %v325 = vld [vmem:[%s179 + $0x3c0] sm:$0xff]
        %v326 = vld [vmem:[%s179 + $0x3c8] sm:$0xff]
        %v327 = vld [vmem:[%s179 + $0x3d0] sm:$0xff]
        %v328 = vld [vmem:[%s179 + $0x3d8] sm:$0xff]
        %v329 = vld [vmem:[%s179 + $0x3e0] sm:$0xff]
        %v330 = vld [vmem:[%s179 + $0x3e8] sm:$0xff]
        %v331 = vld [vmem:[%s179 + $0x3f0] sm:$0xff]
        %v332 = vld [vmem:[%s179 + $0x3f8] sm:$0xff]
        %333 = vmatpush.msra.mxu0 %v265
        %334 = vmatpush.msra.mxu0 %v261
        %335 = vmatpush.msra.mxu0 %v257
        %336 = vmatpush.msra.mxu0 %v253
        %337 = vmatpush.msra.mxu0 %v249
        %338 = vmatpush.msra.mxu0 %v245
        %339 = vmatpush.msra.mxu0 %v241
        %340 = vmatpush.msra.mxu0 %v237
        %341 = vmatpush.msra.mxu0 %v233
        %342 = vmatpush.msra.mxu0 %v229
        %343 = vmatpush.msra.mxu0 %v225
        %344 = vmatpush.msra.mxu0 %v221
        %345 = vmatpush.msra.mxu0 %v217
        %346 = vmatpush.msra.mxu0 %v213
        %347 = vmatpush.msra.mxu0 %v209
        %348 = vmatpush.msra.mxu0 %v205
        %349 = vmatmul.f32.gmra.mxu0 %v203
        %v350 = vpop.f32.mrf.mxu0
        %v351 = vadd.f32 0.0, %v350
        %352 = vdwg.mxu0
        %353 = vmatpush.msra.mxu0 %v329
        %354 = vmatpush.msra.mxu0 %v325
        %355 = vmatpush.msra.mxu0 %v321
        %356 = vmatpush.msra.mxu0 %v317
        %357 = vmatpush.msra.mxu0 %v313
        %358 = vmatpush.msra.mxu0 %v309
        %359 = vmatpush.msra.mxu0 %v305
        %360 = vmatpush.msra.mxu0 %v301
        %361 = vmatpush.msra.mxu0 %v297
        %362 = vmatpush.msra.mxu0 %v293
        %363 = vmatpush.msra.mxu0 %v289
        %364 = vmatpush.msra.mxu0 %v285
        %365 = vmatpush.msra.mxu0 %v281
        %366 = vmatpush.msra.mxu0 %v277
        %367 = vmatpush.msra.mxu0 %v273
        %368 = vmatpush.msra.mxu0 %v269
        %369 = vmatmul.f32.gmra.mxu0 %v204
        %v370 = vpop.f32.mrf.mxu0
        %v371 = vadd.f32 %v351, %v370
        %372 = vdwg.mxu0
        %373 = vmatpush.msra.mxu0 %v266
        %374 = vmatpush.msra.mxu0 %v262
        %375 = vmatpush.msra.mxu0 %v258
        %376 = vmatpush.msra.mxu0 %v254
        %377 = vmatpush.msra.mxu0 %v250
        %378 = vmatpush.msra.mxu0 %v246
        %379 = vmatpush.msra.mxu0 %v242
        %380 = vmatpush.msra.mxu0 %v238
        %381 = vmatpush.msra.mxu0 %v234
        %382 = vmatpush.msra.mxu0 %v230
        %383 = vmatpush.msra.mxu0 %v226
        %384 = vmatpush.msra.mxu0 %v222
        %385 = vmatpush.msra.mxu0 %v218
        %386 = vmatpush.msra.mxu0 %v214
        %387 = vmatpush.msra.mxu0 %v210
        %388 = vmatpush.msra.mxu0 %v206
        %389 = vmatmul.f32.gmra.mxu0 %v203
        %v390 = vpop.f32.mrf.mxu0
        %v391 = vadd.f32 0.0, %v390
        %392 = vdwg.mxu0
        %393 = vmatpush.msra.mxu0 %v330
        %394 = vmatpush.msra.mxu0 %v326
        %395 = vmatpush.msra.mxu0 %v322
        %396 = vmatpush.msra.mxu0 %v318
        %397 = vmatpush.msra.mxu0 %v314
        %398 = vmatpush.msra.mxu0 %v310
        %399 = vmatpush.msra.mxu0 %v306
        %400 = vmatpush.msra.mxu0 %v302
        %401 = vmatpush.msra.mxu0 %v298
        %402 = vmatpush.msra.mxu0 %v294
        %403 = vmatpush.msra.mxu0 %v290
        %404 = vmatpush.msra.mxu0 %v286
        %405 = vmatpush.msra.mxu0 %v282
        %406 = vmatpush.msra.mxu0 %v278
        %407 = vmatpush.msra.mxu0 %v274
        %408 = vmatpush.msra.mxu0 %v270
        %409 = vmatmul.f32.gmra.mxu0 %v204
        %v410 = vpop.f32.mrf.mxu0
        %v411 = vadd.f32 %v391, %v410
        %412 = vdwg.mxu0
        %413 = vmatpush.msra.mxu0 %v267
        %414 = vmatpush.msra.mxu0 %v263
        %415 = vmatpush.msra.mxu0 %v259
        %416 = vmatpush.msra.mxu0 %v255
        %417 = vmatpush.msra.mxu0 %v251
        %418 = vmatpush.msra.mxu0 %v247
        %419 = vmatpush.msra.mxu0 %v243
        %420 = vmatpush.msra.mxu0 %v239
        %421 = vmatpush.msra.mxu0 %v235
        %422 = vmatpush.msra.mxu0 %v231
        %423 = vmatpush.msra.mxu0 %v227
        %424 = vmatpush.msra.mxu0 %v223
        %425 = vmatpush.msra.mxu0 %v219
        %426 = vmatpush.msra.mxu0 %v215
        %427 = vmatpush.msra.mxu0 %v211
        %428 = vmatpush.msra.mxu0 %v207
        %429 = vmatmul.f32.gmra.mxu0 %v203
        %v430 = vpop.f32.mrf.mxu0
        %v431 = vadd.f32 0.0, %v430
        %432 = vdwg.mxu0
        %433 = vmatpush.msra.mxu0 %v331
        %434 = vmatpush.msra.mxu0 %v327
        %435 = vmatpush.msra.mxu0 %v323
        %436 = vmatpush.msra.mxu0 %v319
        %437 = vmatpush.msra.mxu0 %v315
        %438 = vmatpush.msra.mxu0 %v311
        %439 = vmatpush.msra.mxu0 %v307
        %440 = vmatpush.msra.mxu0 %v303
        %441 = vmatpush.msra.mxu0 %v299
        %442 = vmatpush.msra.mxu0 %v295
        %443 = vmatpush.msra.mxu0 %v291
        %444 = vmatpush.msra.mxu0 %v287
        %445 = vmatpush.msra.mxu0 %v283
        %446 = vmatpush.msra.mxu0 %v279
        %447 = vmatpush.msra.mxu0 %v275
        %448 = vmatpush.msra.mxu0 %v271
        %449 = vmatmul.f32.gmra.mxu0 %v204
        %v450 = vpop.f32.mrf.mxu0
        %v451 = vadd.f32 %v431, %v450
        %452 = vdwg.mxu0
        %453 = vmatpush.msra.mxu0 %v268
        %454 = vmatpush.msra.mxu0 %v264
        %455 = vmatpush.msra.mxu0 %v260
        %456 = vmatpush.msra.mxu0 %v256
        %457 = vmatpush.msra.mxu0 %v252
        %458 = vmatpush.msra.mxu0 %v248
        %459 = vmatpush.msra.mxu0 %v244
        %460 = vmatpush.msra.mxu0 %v240
        %461 = vmatpush.msra.mxu0 %v236
        %462 = vmatpush.msra.mxu0 %v232
        %463 = vmatpush.msra.mxu0 %v228
        %464 = vmatpush.msra.mxu0 %v224
        %465 = vmatpush.msra.mxu0 %v220
        %466 = vmatpush.msra.mxu0 %v216
        %467 = vmatpush.msra.mxu0 %v212
        %468 = vmatpush.msra.mxu0 %v208
        %469 = vmatmul.f32.gmra.mxu0 %v203
        %v470 = vpop.f32.mrf.mxu0
        %v471 = vadd.f32 0.0, %v470
        %472 = vdwg.mxu0
        %473 = vmatpush.msra.mxu0 %v332
        %474 = vmatpush.msra.mxu0 %v328
        %475 = vmatpush.msra.mxu0 %v324
        %476 = vmatpush.msra.mxu0 %v320
        %477 = vmatpush.msra.mxu0 %v316
        %478 = vmatpush.msra.mxu0 %v312
        %479 = vmatpush.msra.mxu0 %v308
        %480 = vmatpush.msra.mxu0 %v304
        %481 = vmatpush.msra.mxu0 %v300
        %482 = vmatpush.msra.mxu0 %v296
        %483 = vmatpush.msra.mxu0 %v292
        %484 = vmatpush.msra.mxu0 %v288
        %485 = vmatpush.msra.mxu0 %v284
        %486 = vmatpush.msra.mxu0 %v280
        %487 = vmatpush.msra.mxu0 %v276
        %488 = vmatpush.msra.mxu0 %v272
        %489 = vmatmul.f32.gmra.mxu0 %v204
        %v490 = vpop.f32.mrf.mxu0
        %v491 = vadd.f32 %v471, %v490
        %492 = vdwg.mxu0
        %493 = vst [vmem:[%s200] sm:$0xff] %v371
        %494 = vst [vmem:[%s200 + $0x8] sm:$0xff] %v411
        %495 = vst [vmem:[%s200 + $0x10] sm:$0xff] %v451
        %496 = vst [vmem:[%s200 + $0x18] sm:$0xff] %v491
        %s497 = sand.u32 %s94, 1
        %s498 = scalar_lea.sflag [#allocation4], %s497
        %s499 = sand.u32 %s94, 1
        %s500 = smul.addr %s499, 32
        %s501 = scalar_lea.vmem [#allocation7], %s500
        // Predicated region
        $region37: #{tpu_custom_call.1} parent=27 // pred_check
          %p502 = pneg %p104
        $region38: #{tpu_custom_call.1} parent=27 // pred_check_branch
          %504 = sbr.rel (%p502) target = $region40
        $region39: #{tpu_custom_call.1} parent=27 // pred_region
          %s505 = smul.u32 4, %s25
          %507 = vsyncadd %s498, 0
          %s508 = smul.addr %s24, 8
          %s509 = sadd.s32 %s505, %s508
          %s510 = smul.addr %s509, 8
          %s511 = scalar_lea.hbm %s2, %s510
          %s513 = sshll.u32 %s501, 4
          %s514 = int_to_ptr.vmem [resolvable:$true] %s513
          %s515 = sshll.u32 %s511, 4
          %s516 = int_to_ptr.hbm [resolvable:$true] %s515
          %518 = dma.vmem_to_hbm [thread:$0]  %s514, 512, %s516, %s498
        $region40: #{tpu_custom_call.1} parent=27 // pred_fallthru
          _
      $region28: #{tpu_custom_call.1} parent=5 // pred_fallthru
        _
      %p519 = scmp.le.s32.totalorder 2, %s15
      // Predicated region
      $region41: #{tpu_custom_call.1} parent=5 // pred_check
        %p520 = pneg %p519
      $region42: #{tpu_custom_call.1} parent=5 // pred_check_branch
        %522 = sbr.rel (%p520) target = $region44
      $region43: #{tpu_custom_call.1} parent=5 // pred_region
        %s523 = ssub.s32 %s15, 2
        // Predicated region
        $region45: #{tpu_custom_call.1} parent=43 // pred_check
          %p524 = pneg %p110
        $region46: #{tpu_custom_call.1} parent=43 // pred_check_branch
          %526 = sbr.rel (%p524) target = $region48
        $region47: #{tpu_custom_call.1} parent=43 // pred_region
          %s527 = sand.u32 %s95, 1
          %s528 = scalar_lea.sflag [#allocation4], %s527
          %s529 = sand.u32 %s95, 1
          %s530 = smul.addr %s529, 32
          %s531 = scalar_lea.vmem [#allocation7], %s530
          %533 = dma.done %s528, 512
        $region48: #{tpu_custom_call.1} parent=43 // pred_fallthru
          _
      $region44: #{tpu_custom_call.1} parent=5 // pred_fallthru
        _
    $region6: #{tpu_custom_call.1} parent=1 // loop_footer
      %s19 = sadd.s32 1, %s15
    $region7: #{tpu_custom_call.1} parent=1 // loop_footer_branch
      %14 = sbr.rel target = $region3
    $region8: #{tpu_custom_call.1} parent=1 // loop_exit
      _
    %534 = vsyncpa [#allocation3], 1
    %s535 = scalar_lea.sflag [#allocation3], 1
    %536 = vsyncpa %s535, 1
    %537 = vsyncpa [#allocation6], 1
    %s538 = scalar_lea.sflag [#allocation6], 1
    %539 = vsyncpa %s538, 1
    %540 = vsyncpa [#allocation4], 1
    %s541 = scalar_lea.sflag [#allocation4], 1
    %542 = vsyncpa %s541, 1

</llo_original>
